<compile_context>
chip_gen: v5e
topology: v5e:2x2
jax: 0.10.0
libtpu: 0.0.40
codegen_flags: <defaults>
</compile_context>

<pallas_src>
import functools

import jax
import jax.numpy as jnp
from jax import lax
from jax.experimental import pallas as pl
from jax.experimental.pallas import tpu as pltpu

IN_DIM, H1_DIM, H2_DIM, OUT_DIM = 4, 64, 16, 3
CHUNK_MAX = 512          # sub-chunk width (lanes) processed per inner-loop step
DEFAULT_TILE_B = 32768   # per-grid-step batch tile (sweep 16K-64K)


def mlp_kernel(x_ref, w1_ref, b1_ref, w2_ref, b2_ref, w3_ref, b3_ref, o_ref,
               *, chunk, n_chunks, unroll):
    # Feature-major: x block is [4, TILE_B] (batch on lanes); weights are [out, in].
    # Hoist the tiny VMEM-resident weights/biases out of the sub-chunk loop.
    w1 = w1_ref[...]
    b1 = b1_ref[...]
    w2 = w2_ref[...]
    b2 = b2_ref[...]
    w3 = w3_ref[...]
    b3 = b3_ref[...]

    def body(c, carry):
        col = pl.multiple_of(c * chunk, chunk)
        x = x_ref[:, pl.ds(col, chunk)]                                   # [4,  C] bf16

        h1 = jnp.dot(w1, x, preferred_element_type=jnp.float32)          # [64, C] f32
        h1 = jnp.maximum(h1 + b1, 0.0)                                   # bias + ReLU

        h2 = jnp.dot(w2, h1.astype(w2.dtype),
                     preferred_element_type=jnp.float32)                 # [16, C] f32
        # Dropout(0.2) -> identity in eval/inference mode.
        h2 = jnp.maximum(h2 + b2, 0.0)                                   # bias + ReLU

        out = jnp.dot(w3, h2.astype(w3.dtype),
                      preferred_element_type=jnp.float32)                # [3,  C] f32
        o_ref[:, pl.ds(col, chunk)] = (out + b3).astype(o_ref.dtype)
        return carry

    lax.fori_loop(0, n_chunks, body, 0, unroll=unroll)


def _round_up(n, m):
    return ((n + m - 1) // m) * m


def mlp_forward(x, params, *, tile_b=DEFAULT_TILE_B):
    """x: [B, 4] float32 -> [B, 3] float32."""
    w1, b1, w2, b2, w3, b3 = params
    B = x.shape[0]

    # Batch padded only to a multiple of the (<=512-wide) sub-chunk, never of
    # the full tile, so large tiles don't waste DMA/compute on padding.
    b128 = _round_up(max(B, 1), 128)
    chunk = min(CHUNK_MAX, b128)

    # Number of grid steps: big tiles to amortize the ~0.35us per-step
    # overhead, but keep >=2 steps when the batch is large enough so v7x's
    # two TensorCores (dimension_semantics="parallel") both get work.
    tile_cap = min(tile_b, b128)
    n_steps = max(pl.cdiv(b128, tile_cap), 2 if b128 >= 2 * chunk else 1)
    tile_b = _round_up(pl.cdiv(b128, n_steps), chunk)
    b_pad = tile_b * n_steps

    n_chunks = tile_b // chunk
    unroll = min(n_chunks, 8)

    # Wrapper-side layout change + bf16 cast, fused pad (no zero-fill + DUS):
    # [B,4] f32 -> [4, b_pad] bf16.
    xt = jnp.pad(x.astype(jnp.bfloat16).T, ((0, 0), (0, b_pad - B)))

    resident = lambda shape: pl.BlockSpec(shape, lambda i: (0, 0))  # VMEM-resident

    kernel = functools.partial(mlp_kernel, chunk=chunk, n_chunks=n_chunks,
                               unroll=unroll)

    out_t = pl.pallas_call(
        kernel,
        out_shape=jax.ShapeDtypeStruct((OUT_DIM, b_pad), jnp.float32),
        grid=(n_steps,),
        in_specs=[
            pl.BlockSpec((IN_DIM, tile_b), lambda i: (0, i)),   # x tile (lane-dense)
            resident((H1_DIM, IN_DIM)),                          # w1 [64, 4]
            resident((H1_DIM, 1)),                               # b1 [64, 1]
            resident((H2_DIM, H1_DIM)),                          # w2 [16, 64]
            resident((H2_DIM, 1)),                               # b2 [16, 1]
            resident((OUT_DIM, H2_DIM)),                         # w3 [3, 16]
            resident((OUT_DIM, 1)),                              # b3 [3, 1]
        ],
        out_specs=pl.BlockSpec((OUT_DIM, tile_b), lambda i: (0, i)),
        compiler_params=pltpu.CompilerParams(
            dimension_semantics=("parallel",),
            vmem_limit_bytes=48 * 1024 * 1024,
        ),
    )(xt, w1, b1, w2, b2, w3, b3)

    return out_t[:, :B].T  # back to [B, 3]


def init_params(key):
    """Deterministic init mimicking torch.nn.Linear (uniform +-1/sqrt(fan_in)).

    Weights stored as [out, in] (bf16 MXU inputs); biases as [out, 1] f32.
    """
    def linear(k, fan_in, fan_out):
        kw, kb = jax.random.split(k)
        bound = 1.0 / jnp.sqrt(fan_in)
        w = jax.random.uniform(kw, (fan_out, fan_in), jnp.float32, -bound, bound)
        b = jax.random.uniform(kb, (fan_out, 1), jnp.float32, -bound, bound)
        return w.astype(jnp.bfloat16), b

    k1, k2, k3 = jax.random.split(key, 3)
    w1, b1 = linear(k1, IN_DIM, H1_DIM)
    w2, b2 = linear(k2, H1_DIM, H2_DIM)
    w3, b3 = linear(k3, H2_DIM, OUT_DIM)
    return (w1, b1, w2, b2, w3, b3)


def mlp_reference(x, params):
    """Pure-JAX reference with the same precision policy as the kernel."""
    w1, b1, w2, b2, w3, b3 = params
    xb = x.astype(jnp.bfloat16)
    h1 = jnp.dot(xb, w1.T, preferred_element_type=jnp.float32) + b1.T
    h1 = jnp.maximum(h1, 0.0)
    h2 = jnp.dot(h1.astype(jnp.bfloat16), w2.T,
                 preferred_element_type=jnp.float32) + b2.T
    h2 = jnp.maximum(h2, 0.0)  # dropout = identity (eval)
    return jnp.dot(h2.astype(jnp.bfloat16), w3.T,
                   preferred_element_type=jnp.float32) + b3.T


if __name__ == "__main__":
    key = jax.random.PRNGKey(0)
    kx, kp = jax.random.split(key)

    B = 8
    x = jax.random.normal(kx, (B, IN_DIM), jnp.float32)
    params = init_params(kp)

    out = mlp_forward(x, params)
    out = jax.block_until_ready(out)

    ref = mlp_reference(x, params)
    assert out.shape == (B, OUT_DIM), out.shape
    assert jnp.allclose(out, ref, atol=5e-3, rtol=5e-3), "mismatch vs reference"

    print("KERNEL_OK")
</pallas_src>

<mosaic_0001>
module attributes {stable_mosaic.version = 11 : i64} {
  func.func @mlp_kernel(%arg0: i32, %arg1: memref<4x128xbf16, #tpu.memory_space<vmem>>, %arg2: memref<64x4xbf16, #tpu.memory_space<vmem>>, %arg3: memref<64x1xf32, #tpu.memory_space<vmem>>, %arg4: memref<16x64xbf16, #tpu.memory_space<vmem>>, %arg5: memref<16x1xf32, #tpu.memory_space<vmem>>, %arg6: memref<3x16xbf16, #tpu.memory_space<vmem>>, %arg7: memref<3x1xf32, #tpu.memory_space<vmem>>, %arg8: memref<3x128xf32, #tpu.memory_space<vmem>>) attributes {dimension_semantics = [#tpu.dimension_semantics<parallel>], iteration_bounds = array<i64: 1>, scalar_prefetch = 0 : i64, scratch_operands = 0 : i64, tpu.core_type = #tpu.core_type<tc>, window_params = [{transform_indices = @transform_0, window_bounds = array<i64: 4, 128>}, {pipeline_mode = #tpu.pipeline_mode<synchronous>, transform_indices = @transform_1, window_bounds = array<i64: 64, 4>}, {pipeline_mode = #tpu.pipeline_mode<synchronous>, transform_indices = @transform_2, window_bounds = array<i64: 64, 1>}, {pipeline_mode = #tpu.pipeline_mode<synchronous>, transform_indices = @transform_3, window_bounds = array<i64: 16, 64>}, {pipeline_mode = #tpu.pipeline_mode<synchronous>, transform_indices = @transform_4, window_bounds = array<i64: 16, 1>}, {pipeline_mode = #tpu.pipeline_mode<synchronous>, transform_indices = @transform_5, window_bounds = array<i64: 3, 16>}, {pipeline_mode = #tpu.pipeline_mode<synchronous>, transform_indices = @transform_6, window_bounds = array<i64: 3, 1>}, {transform_indices = @transform_7, window_bounds = array<i64: 3, 128>}]} {
    %c0 = arith.constant 0 : index
    %c0_0 = arith.constant 0 : index
    %0 = vector.load %arg2[%c0, %c0_0] : memref<64x4xbf16, #tpu.memory_space<vmem>>, vector<64x4xbf16>
    %c0_1 = arith.constant 0 : index
    %c0_2 = arith.constant 0 : index
    %1 = vector.load %arg3[%c0_1, %c0_2] : memref<64x1xf32, #tpu.memory_space<vmem>>, vector<64x1xf32>
    %c0_3 = arith.constant 0 : index
    %c0_4 = arith.constant 0 : index
    %2 = vector.load %arg4[%c0_3, %c0_4] : memref<16x64xbf16, #tpu.memory_space<vmem>>, vector<16x64xbf16>
    %c0_5 = arith.constant 0 : index
    %c0_6 = arith.constant 0 : index
    %3 = vector.load %arg5[%c0_5, %c0_6] : memref<16x1xf32, #tpu.memory_space<vmem>>, vector<16x1xf32>
    %c0_7 = arith.constant 0 : index
    %c0_8 = arith.constant 0 : index
    %4 = vector.load %arg6[%c0_7, %c0_8] : memref<3x16xbf16, #tpu.memory_space<vmem>>, vector<3x16xbf16>
    %c0_9 = arith.constant 0 : index
    %c0_10 = arith.constant 0 : index
    %5 = vector.load %arg7[%c0_9, %c0_10] : memref<3x1xf32, #tpu.memory_space<vmem>>, vector<3x1xf32>
    %c0_i32 = arith.constant 0 : i32
    %c128_i32 = arith.constant 128 : i32
    %6 = arith.muli %c0_i32, %c128_i32 : i32
    %7 = tpu.assume_multiple %6, 128 : i32
    %c0_11 = arith.constant 0 : index
    %8 = arith.index_cast %7 : i32 to index
    %9 = vector.load %arg1[%c0_11, %8] : memref<4x128xbf16, #tpu.memory_space<vmem>>, vector<4x128xbf16>
    %cst = arith.constant dense<0.000000e+00> : vector<64x128xf32>
    %10 = tpu.matmul %0, %9, %cst {dimension_numbers = #tpu.dot_dimension_numbers<[1], [0], [0], [1], [0, 0, 1, 1], [], []>} : vector<64x4xbf16>, vector<4x128xbf16>, vector<64x128xf32> -> vector<64x128xf32>
    %11 = vector.broadcast %1 : vector<64x1xf32> to vector<64x128xf32>
    %12 = arith.addf %10, %11 : vector<64x128xf32>
    %cst_12 = arith.constant 0.000000e+00 : f32
    %13 = vector.broadcast %cst_12 : f32 to vector<64x128xf32>
    %14 = arith.maximumf %12, %13 : vector<64x128xf32>
    %15 = arith.truncf %14 : vector<64x128xf32> to vector<64x128xbf16>
    %cst_13 = arith.constant dense<0.000000e+00> : vector<16x128xf32>
    %16 = tpu.matmul %2, %15, %cst_13 {dimension_numbers = #tpu.dot_dimension_numbers<[1], [0], [0], [1], [0, 0, 1, 1], [], []>} : vector<16x64xbf16>, vector<64x128xbf16>, vector<16x128xf32> -> vector<16x128xf32>
    %17 = vector.broadcast %3 : vector<16x1xf32> to vector<16x128xf32>
    %18 = arith.addf %16, %17 : vector<16x128xf32>
    %cst_14 = arith.constant 0.000000e+00 : f32
    %19 = vector.broadcast %cst_14 : f32 to vector<16x128xf32>
    %20 = arith.maximumf %18, %19 : vector<16x128xf32>
    %21 = arith.truncf %20 : vector<16x128xf32> to vector<16x128xbf16>
    %cst_15 = arith.constant dense<0.000000e+00> : vector<3x128xf32>
    %22 = tpu.matmul %4, %21, %cst_15 {dimension_numbers = #tpu.dot_dimension_numbers<[1], [0], [0], [1], [0, 0, 1, 1], [], []>} : vector<3x16xbf16>, vector<16x128xbf16>, vector<3x128xf32> -> vector<3x128xf32>
    %23 = vector.broadcast %5 : vector<3x1xf32> to vector<3x128xf32>
    %24 = arith.addf %22, %23 : vector<3x128xf32>
    %c0_16 = arith.constant 0 : index
    %25 = arith.index_cast %7 : i32 to index
    %26 = vector.load %arg8[%c0_16, %25] : memref<3x128xf32, #tpu.memory_space<vmem>>, vector<3x128xf32>
    tpu.vector_store %arg8[%c0_16, %25], %24 {strides = array<i32>} : memref<3x128xf32, #tpu.memory_space<vmem>>, vector<3x128xf32>,
    %c1_i32 = arith.constant 1 : i32
    return
  }
  func.func @transform_0(%arg0: i32) -> (i32, i32) {
    %c0_i32 = arith.constant 0 : i32
    %c0_i32_0 = arith.constant 0 : i32
    return %c0_i32, %arg0 : i32, i32
  }
  func.func @transform_1(%arg0: i32) -> (i32, i32) {
    %c0_i32 = arith.constant 0 : i32
    %c0_i32_0 = arith.constant 0 : i32
    %c0_i32_1 = arith.constant 0 : i32
    return %c0_i32, %c0_i32_0 : i32, i32
  }
  func.func @transform_2(%arg0: i32) -> (i32, i32) {
    %c0_i32 = arith.constant 0 : i32
    %c0_i32_0 = arith.constant 0 : i32
    %c0_i32_1 = arith.constant 0 : i32
    return %c0_i32, %c0_i32_0 : i32, i32
  }
  func.func @transform_3(%arg0: i32) -> (i32, i32) {
    %c0_i32 = arith.constant 0 : i32
    %c0_i32_0 = arith.constant 0 : i32
    %c0_i32_1 = arith.constant 0 : i32
    return %c0_i32, %c0_i32_0 : i32, i32
  }
  func.func @transform_4(%arg0: i32) -> (i32, i32) {
    %c0_i32 = arith.constant 0 : i32
    %c0_i32_0 = arith.constant 0 : i32
    %c0_i32_1 = arith.constant 0 : i32
    return %c0_i32, %c0_i32_0 : i32, i32
  }
  func.func @transform_5(%arg0: i32) -> (i32, i32) {
    %c0_i32 = arith.constant 0 : i32
    %c0_i32_0 = arith.constant 0 : i32
    %c0_i32_1 = arith.constant 0 : i32
    return %c0_i32, %c0_i32_0 : i32, i32
  }
  func.func @transform_6(%arg0: i32) -> (i32, i32) {
    %c0_i32 = arith.constant 0 : i32
    %c0_i32_0 = arith.constant 0 : i32
    %c0_i32_1 = arith.constant 0 : i32
    return %c0_i32, %c0_i32_0 : i32, i32
  }
  func.func @transform_7(%arg0: i32) -> (i32, i32) {
    %c0_i32 = arith.constant 0 : i32
    %c0_i32_0 = arith.constant 0 : i32
    return %c0_i32, %arg0 : i32, i32
  }
}

</mosaic_0001>

<llo_original>
// kernel: tpu_custom_call.1
$region0: #{tpu_custom_call.1}
  #allocation0 [shape = 'u32[]', space=smem, size = 0x4, offset = 0x4, fixed_abs, tag = 'smem constant byte address 0x4 - core index']
  #allocation1 [shape = 'u32[72,128]{1,0:T(1,128)}', space=vmem, size = 0x9000, scoped, tag = 'internal scratch']
  %s0 = inlined_call_operand.vmem [shape: bf16[4,128], index: 0, kind: input, shape index: {}]
  %s1 = inlined_call_operand.vmem [shape: bf16[64,4], index: 1, kind: input, shape index: {}]
  %s2 = inlined_call_operand.vmem [shape: f32[64,1], index: 2, kind: input, shape index: {}]
  %s3 = inlined_call_operand.vmem [shape: bf16[16,64], index: 3, kind: input, shape index: {}]
  %s4 = inlined_call_operand.vmem [shape: f32[16,1], index: 4, kind: input, shape index: {}]
  %s5 = inlined_call_operand.vmem [shape: bf16[3,16], index: 5, kind: input, shape index: {}]
  %s6 = inlined_call_operand.vmem [shape: f32[3,1], index: 6, kind: input, shape index: {}]
  %s7 = inlined_call_operand.hbm [shape: f32[3,128], index: 7, kind: output, shape index: {}]
  %s8 = sld [smem:[#allocation0]]
  $region38: #{tpu_custom_call.1} parent=0
    _
  %s10 = ssub.s32 1, %s8
  %s11 = scalar_select 0, %s10, %s8
  $region1: #{tpu_custom_call.1} parent=0
    #allocation2 [shape = 'u8[2048]{0}', space=vmem, size = 0x800, scoped, tag = 'output window, operand 0, single buffered']
    #allocation3 [shape = 's32[1]{0}', space=sflag, size = 0x4, scoped, tag = 'scoped memory for tpu_custom_call.1']
    %12 = vsyncpa [#allocation3], 0
    // Predicated region
    $region2: #{tpu_custom_call.1} parent=1 // pred_check
      _
    $region3: #{tpu_custom_call.1} parent=1 // pred_check_branch
      %14 = sbr.rel (0) target = $region5
    $region4: #{tpu_custom_call.1} parent=1 // pred_region
      _
    $region5: #{tpu_custom_call.1} parent=1 // pred_fallthru
      _
    // Predicated region
    $region6: #{tpu_custom_call.1} parent=1 // pred_check
      _
    $region7: #{tpu_custom_call.1} parent=1 // pred_check_branch
      %16 = sbr.rel (0) target = $region9
    $region8: #{tpu_custom_call.1} parent=1 // pred_region
      _
    $region9: #{tpu_custom_call.1} parent=1 // pred_fallthru
      _
    // Predicated region
    $region10: #{tpu_custom_call.1} parent=1 // pred_check
      _
    $region11: #{tpu_custom_call.1} parent=1 // pred_check_branch
      %18 = sbr.rel (0) target = $region13
    $region12: #{tpu_custom_call.1} parent=1 // pred_region
      _
    $region13: #{tpu_custom_call.1} parent=1 // pred_fallthru
      _
    // Predicated region
    $region14: #{tpu_custom_call.1} parent=1 // pred_check
      _
    $region15: #{tpu_custom_call.1} parent=1 // pred_check_branch
      %20 = sbr.rel (0) target = $region17
    $region16: #{tpu_custom_call.1} parent=1 // pred_region
      _
    $region17: #{tpu_custom_call.1} parent=1 // pred_fallthru
      _
    // Predicated region
    $region18: #{tpu_custom_call.1} parent=1 // pred_check
      _
    $region19: #{tpu_custom_call.1} parent=1 // pred_check_branch
      %22 = sbr.rel (0) target = $region21
    $region20: #{tpu_custom_call.1} parent=1 // pred_region
      _
    $region21: #{tpu_custom_call.1} parent=1 // pred_fallthru
      _
    // Predicated region
    $region22: #{tpu_custom_call.1} parent=1 // pred_check
      _
    $region23: #{tpu_custom_call.1} parent=1 // pred_check_branch
      %24 = sbr.rel (0) target = $region25
    $region24: #{tpu_custom_call.1} parent=1 // pred_region
      _
    $region25: #{tpu_custom_call.1} parent=1 // pred_fallthru
      _
    // Predicated region
    $region26: #{tpu_custom_call.1} parent=1 // pred_check
      _
    $region27: #{tpu_custom_call.1} parent=1 // pred_check_branch
      %26 = sbr.rel (0) target = $region29
    $region28: #{tpu_custom_call.1} parent=1 // pred_region
      _
    $region29: #{tpu_custom_call.1} parent=1 // pred_fallthru
      _
    %v28 = vld [vmem:[%s1] sm:$0xf]
    %v29 = vld [vmem:[%s1 + $0x4] sm:$0xf]
    %v30 = vld [vmem:[%s1 + $0x8] sm:$0xf]
    %v31 = vld [vmem:[%s1 + $0xc] sm:$0xf]
    %v32 = vld [vmem:[%s1 + $0x10] sm:$0xf]
    %v33 = vld [vmem:[%s1 + $0x14] sm:$0xf]
    %v34 = vld [vmem:[%s1 + $0x18] sm:$0xf]
    %v35 = vld [vmem:[%s1 + $0x1c] sm:$0xf]
    %v36 = vld [vmem:[%s2] sm:$0xff]
    %v37 = vld [vmem:[%s2 + $0x8] sm:$0xff]
    %v38 = vld [vmem:[%s2 + $0x10] sm:$0xff]
    %v39 = vld [vmem:[%s2 + $0x18] sm:$0xff]
    %v40 = vld [vmem:[%s2 + $0x20] sm:$0xff]
    %v41 = vld [vmem:[%s2 + $0x28] sm:$0xff]
    %v42 = vld [vmem:[%s2 + $0x30] sm:$0xff]
    %v43 = vld [vmem:[%s2 + $0x38] sm:$0xff]
    %v44 = vld [vmem:[%s3] sm:$0xf]
    %v45 = vld [vmem:[%s3 + $0x4] sm:$0xf]
    %v46 = vld [vmem:[%s4] sm:$0xff]
    %v47 = vld [vmem:[%s4 + $0x8] sm:$0xff]
    %v48 = vld [vmem:[%s5] sm:$0x3]
    %v49 = vld [vmem:[%s6] sm:$0x7]
    %v50 = vld [vmem:[%s0] sm:$0x3]
    %52 = vset.pattern.permute.xlu0 0
    %53 = vperm.xlu0 %52, %v36
    %v54 = vpop.permute.xlu0 %53
    %57 = vset.pattern.permute.xlu0 0
    %58 = vperm.xlu0 %57, %v37
    %v59 = vpop.permute.xlu0 %58
    %62 = vset.pattern.permute.xlu0 0
    %63 = vperm.xlu0 %62, %v38
    %v64 = vpop.permute.xlu0 %63
    %67 = vset.pattern.permute.xlu0 0
    %68 = vperm.xlu0 %67, %v39
    %v69 = vpop.permute.xlu0 %68
    %72 = vset.pattern.permute.xlu0 0
    %73 = vperm.xlu0 %72, %v40
    %v74 = vpop.permute.xlu0 %73
    %77 = vset.pattern.permute.xlu0 0
    %78 = vperm.xlu0 %77, %v41
    %v79 = vpop.permute.xlu0 %78
    %82 = vset.pattern.permute.xlu0 0
    %83 = vperm.xlu0 %82, %v42
    %v84 = vpop.permute.xlu0 %83
    %87 = vset.pattern.permute.xlu0 0
    %88 = vperm.xlu0 %87, %v43
    %v89 = vpop.permute.xlu0 %88
    %v99 = vunpack.c.l.b16 %v28
    %v100 = vunpack.c.l.b16 %v29
    %v101 = vunpack.c.l.b16 %v30
    %v102 = vunpack.c.l.b16 %v31
    %v103 = vunpack.c.l.b16 %v32
    %v104 = vunpack.c.l.b16 %v33
    %v105 = vunpack.c.l.b16 %v34
    %v106 = vunpack.c.l.b16 %v35
    %v107 = vpack.c.b16 %v100, %v99
    %v108 = vpack.c.b16 %v102, %v101
    %v109 = vpack.c.b16 %v104, %v103
    %v110 = vpack.c.b16 %v106, %v105
    %vm111 = vcmask 31744
    %v113 = vsel %vm111, %v107, 0
    %v116 = vsel %vm111, %v108, 0
    %v119 = vsel %vm111, %v109, 0
    %v122 = vsel %vm111, %v110, 0
    %vm124 = vcmask 1041408
    %v126 = vsel %vm124, %v50, 0
    %128 = vmatpush.bf16.msra.mxu0 0
    %129 = vmatpush.bf16.msra.mxu0 0
    %130 = vmatpush.bf16.msra.mxu0 0
    %131 = vmatpush.bf16.msra.mxu0 0
    %132 = vmatpush.bf16.msra.mxu0 0
    %133 = vmatpush.bf16.msra.mxu0 0
    %134 = vmatpush.bf16.msra.mxu0 0
    %135 = vmatpush.bf16.msra.mxu0 %v126
    %136 = vmatmul.bf16.gmra.mxu0 %v113
    %v137 = vpop.f32.mrf.mxu0
    %v138 = vadd.f32 %v54, %v137
    %v139 = vpop.f32.mrf.mxu0
    %v140 = vadd.f32 %v59, %v139
    %141 = vmatmul.bf16.gmra.mxu0 %v116
    %v142 = vpop.f32.mrf.mxu0
    %v143 = vadd.f32 %v64, %v142
    %v144 = vpop.f32.mrf.mxu0
    %v145 = vadd.f32 %v69, %v144
    %146 = vmatmul.bf16.gmra.mxu0 %v119
    %v147 = vpop.f32.mrf.mxu0
    %v148 = vadd.f32 %v74, %v147
    %v149 = vpop.f32.mrf.mxu0
    %v150 = vadd.f32 %v79, %v149
    %151 = vmatmul.bf16.gmra.mxu0 %v122
    %v152 = vpop.f32.mrf.mxu0
    %v153 = vadd.f32 %v84, %v152
    %v154 = vpop.f32.mrf.mxu0
    %v155 = vadd.f32 %v89, %v154
    %156 = vdwg.mxu0
    %v157 = vmax.f32 %v138, 0.0
    %v158 = vmax.f32 %v140, 0.0
    %v159 = vmax.f32 %v143, 0.0
    %v160 = vmax.f32 %v145, 0.0
    %v161 = vmax.f32 %v148, 0.0
    %v162 = vmax.f32 %v150, 0.0
    %v163 = vmax.f32 %v153, 0.0
    %v164 = vmax.f32 %v155, 0.0
    %v165 = vpack.c.bf16 %v158, %v157
    %v166 = vpack.c.bf16 %v160, %v159
    %v167 = vpack.c.bf16 %v162, %v161
    %v168 = vpack.c.bf16 %v164, %v163
    %170 = vset.pattern.permute.xlu0 0
    %171 = vperm.xlu0 %170, %v46
    %v172 = vpop.permute.xlu0 %171
    %175 = vset.pattern.permute.xlu0 0
    %176 = vperm.xlu0 %175, %v47
    %v177 = vpop.permute.xlu0 %176
    %v181 = vunpack.c.l.b16 %v44
    %v182 = vunpack.c.l.b16 %v45
    %v183 = vpack.c.b16 %v182, %v181
    %vm184 = vcmask 523264
    %v186 = vsel %vm184, %v183, 0
    %188 = vmatpush.bf16.msra.mxu0 0
    %189 = vmatpush.bf16.msra.mxu0 0
    %190 = vmatpush.bf16.msra.mxu0 0
    %191 = vmatpush.bf16.msra.mxu0 0
    %192 = vmatpush.bf16.msra.mxu0 %v168
    %193 = vmatpush.bf16.msra.mxu0 %v167
    %194 = vmatpush.bf16.msra.mxu0 %v166
    %195 = vmatpush.bf16.msra.mxu0 %v165
    %196 = vmatmul.bf16.gmra.mxu0 %v186
    %v197 = vpop.f32.mrf.mxu0
    %v198 = vadd.f32 %v172, %v197
    %v199 = vpop.f32.mrf.mxu0
    %v200 = vadd.f32 %v177, %v199
    %201 = vdwg.mxu0
    %v202 = vmax.f32 %v198, 0.0
    %v203 = vmax.f32 %v200, 0.0
    %v204 = vpack.c.bf16 %v203, %v202
    %206 = vset.pattern.permute.xlu0 0
    %207 = vperm.xlu0 %206, %v49
    %v208 = vpop.permute.xlu0 %207
    %vm210 = vcmask 130048
    %v212 = vsel %vm210, %v48, 0
    %214 = vmatpush.bf16.msra.mxu0 0
    %215 = vmatpush.bf16.msra.mxu0 0
    %216 = vmatpush.bf16.msra.mxu0 0
    %217 = vmatpush.bf16.msra.mxu0 0
    %218 = vmatpush.bf16.msra.mxu0 0
    %219 = vmatpush.bf16.msra.mxu0 0
    %220 = vmatpush.bf16.msra.mxu0 0
    %221 = vmatpush.bf16.msra.mxu0 %v204
    %222 = vmatmul.bf16.gmra.mxu0 %v212
    %v223 = vpop.f32.mrf.mxu0
    %v224 = vadd.f32 %v208, %v223
    %v225 = vpop.f32.mrf.mxu0
    %226 = vdwg.mxu0
    %227 = vst [vmem:[#allocation2] sm:$0x7] %v224
    // Predicated region
    $region30: #{tpu_custom_call.1} parent=1 // pred_check
      _
    $region31: #{tpu_custom_call.1} parent=1 // pred_check_branch
      %229 = sbr.rel (0) target = $region33
    $region32: #{tpu_custom_call.1} parent=1 // pred_region
      %231 = vsyncadd [#allocation3], 0
      %s233 = sshll.u32 [#allocation2], 4
      %s234 = int_to_ptr.vmem [resolvable:$true] %s233
      %s235 = sshll.u32 %s7, 4
      %s236 = int_to_ptr.hbm [resolvable:$true] %s235
      %238 = dma.vmem_to_hbm [thread:$0]  %s234, 64, %s236, [#allocation3]
    $region33: #{tpu_custom_call.1} parent=1 // pred_fallthru
      _
    // Predicated region
    $region34: #{tpu_custom_call.1} parent=1 // pred_check
      _
    $region35: #{tpu_custom_call.1} parent=1 // pred_check_branch
      %240 = sbr.rel (0) target = $region37
    $region36: #{tpu_custom_call.1} parent=1 // pred_region
      %242 = dma.done [#allocation3], 64
    $region37: #{tpu_custom_call.1} parent=1 // pred_fallthru
      _
    %243 = vsyncpa [#allocation3], 1

</llo_original>
